<compile_context>
chip_gen: v5e
topology: v5e:2x2
jax: 0.10.0
libtpu: 0.0.40
codegen_flags: <defaults>
</compile_context>

<pallas_src>
import jax
import jax.numpy as jnp
from jax.experimental import pallas as pl
from jax.experimental.pallas import tpu as pltpu

EPS = 1e-5  # PyTorch InstanceNorm2d default eps


# ----------------------------- Pallas kernel --------------------------------

def _adpin2d_kernel(x_ref, g_ref, b_ref, o_ref):
    # x block: (1, C, HW)  -- one sample, channels on sublanes, spatial on lanes.
    # g/b blocks: (1, C, 1) -- per-(sample, channel) affine parameters.
    x = x_ref[0].astype(jnp.float32)                       # (C, HW)
    # InstanceNorm2d: per-channel mean/var over the spatial dim (biased variance).
    mu = jnp.mean(x, axis=1, keepdims=True)                # (C, 1)
    var = jnp.mean((x - mu) ** 2, axis=1, keepdims=True)   # (C, 1)
    xn = (x - mu) * jax.lax.rsqrt(var + EPS)               # (C, HW)
    y = xn * g_ref[0].astype(jnp.float32) + b_ref[0].astype(jnp.float32)
    o_ref[0] = y.astype(o_ref.dtype)


# --------------------------- pallas_call wrapper -----------------------------

def adpin2d(x, gamma, beta):
    """x: (B, C, H, W) NCHW.  gamma, beta: (B, C) (or anything with leading (B, C)).

    Returns NCHW output matching the PyTorch module.
    """
    B, C, H, W = x.shape
    HW = H * W
    x3 = x.reshape(B, C, HW)                 # free row-major reshape, no transpose
    g3 = gamma.reshape(B, C, 1)
    b3 = beta.reshape(B, C, 1)

    out = pl.pallas_call(
        _adpin2d_kernel,
        out_shape=jax.ShapeDtypeStruct((B, C, HW), x.dtype),
        grid=(B,),
        in_specs=[
            pl.BlockSpec((1, C, HW), lambda b: (b, 0, 0)),
            pl.BlockSpec((1, C, 1), lambda b: (b, 0, 0)),
            pl.BlockSpec((1, C, 1), lambda b: (b, 0, 0)),
        ],
        out_specs=pl.BlockSpec((1, C, HW), lambda b: (b, 0, 0)),
        compiler_params=pltpu.CompilerParams(
            dimension_semantics=("parallel",)),  # 2-wide parallel axis -> both v7x TCs
    )(x3, g3, b3)
    return out.reshape(B, C, H, W)
    # TODO(synk): for very large H*W (block not fitting VMEM) a spatially tiled
    # two-pass (stats then normalize) variant would be needed; not required at
    # the shapes this module is used with.


# --------------------------------- main --------------------------------------

if __name__ == "__main__":
    key = jax.random.PRNGKey(0)
    kx, kg, kb = jax.random.split(key, 3)

    B, C, H, W = 2, 4, 16, 16
    x = jax.random.normal(kx, (B, C, H, W), jnp.float32)
    gamma = 1.0 + 0.1 * jax.random.normal(kg, (B, C), jnp.float32)
    beta = 0.1 * jax.random.normal(kb, (B, C), jnp.float32)

    out = adpin2d(x, gamma, beta)
    out = jax.block_until_ready(out)

    assert out.shape == (B, C, H, W), out.shape
    assert bool(jnp.all(jnp.isfinite(out)))

    # Pure-JAX reference (matches PyTorch InstanceNorm2d: biased var, eps=1e-5).
    mu = x.mean(axis=(2, 3), keepdims=True)
    var = ((x - mu) ** 2).mean(axis=(2, 3), keepdims=True)
    ref = (x - mu) / jnp.sqrt(var + EPS) * gamma[:, :, None, None] + beta[:, :, None, None]
    assert jnp.allclose(out, ref, atol=1e-4, rtol=1e-4), float(jnp.max(jnp.abs(out - ref)))

    print("KERNEL_OK")
</pallas_src>

<mosaic_0001>
module attributes {stable_mosaic.version = 11 : i64} {
  func.func @_adpin2d_kernel(%arg0: i32, %arg1: memref<1x4x256xf32, #tpu.memory_space<vmem>>, %arg2: memref<1x4x1xf32, #tpu.memory_space<vmem>>, %arg3: memref<1x4x1xf32, #tpu.memory_space<vmem>>, %arg4: memref<1x4x256xf32, #tpu.memory_space<vmem>>) attributes {dimension_semantics = [#tpu.dimension_semantics<parallel>], iteration_bounds = array<i64: 2>, scalar_prefetch = 0 : i64, scratch_operands = 0 : i64, tpu.core_type = #tpu.core_type<tc>, window_params = [{transform_indices = @transform_0, window_bounds = array<i64: 1, 4, 256>}, {transform_indices = @transform_1, window_bounds = array<i64: 1, 4, 1>}, {transform_indices = @transform_2, window_bounds = array<i64: 1, 4, 1>}, {transform_indices = @transform_3, window_bounds = array<i64: 1, 4, 256>}]} {
    %c0 = arith.constant 0 : index
    %c0_0 = arith.constant 0 : index
    %c0_1 = arith.constant 0 : index
    %0 = vector.load %arg1[%c0, %c0_0, %c0_1] : memref<1x4x256xf32, #tpu.memory_space<vmem>>, vector<1x4x256xf32>
    %1 = vector.shape_cast %0 : vector<1x4x256xf32> to vector<4x256xf32>
    %cst = arith.constant dense<0.000000e+00> : vector<4xf32>
    %2 = vector.multi_reduction <add>, %1, %cst [1] : vector<4x256xf32> to vector<4xf32>
    %3 = vector.shape_cast %2 : vector<4xf32> to vector<4x1xf32>
    %cst_2 = arith.constant 2.560000e+02 : f32
    %4 = vector.broadcast %cst_2 : f32 to vector<4x1xf32>
    %5 = arith.divf %3, %4 : vector<4x1xf32>
    %6 = vector.broadcast %5 : vector<4x1xf32> to vector<4x256xf32>
    %7 = arith.subf %1, %6 : vector<4x256xf32>
    %8 = arith.mulf %7, %7 : vector<4x256xf32>
    %cst_3 = arith.constant dense<0.000000e+00> : vector<4xf32>
    %9 = vector.multi_reduction <add>, %8, %cst_3 [1] : vector<4x256xf32> to vector<4xf32>
    %10 = vector.shape_cast %9 : vector<4xf32> to vector<4x1xf32>
    %cst_4 = arith.constant 2.560000e+02 : f32
    %11 = vector.broadcast %cst_4 : f32 to vector<4x1xf32>
    %12 = arith.divf %10, %11 : vector<4x1xf32>
    %13 = vector.broadcast %5 : vector<4x1xf32> to vector<4x256xf32>
    %14 = arith.subf %1, %13 : vector<4x256xf32>
    %cst_5 = arith.constant 9.99999974E-6 : f32
    %15 = vector.broadcast %cst_5 : f32 to vector<4x1xf32>
    %16 = arith.addf %12, %15 : vector<4x1xf32>
    %17 = math.rsqrt %16 : vector<4x1xf32>
    %18 = vector.broadcast %17 : vector<4x1xf32> to vector<4x256xf32>
    %19 = arith.mulf %14, %18 : vector<4x256xf32>
    %c0_6 = arith.constant 0 : index
    %c0_7 = arith.constant 0 : index
    %c0_8 = arith.constant 0 : index
    %20 = vector.load %arg2[%c0_6, %c0_7, %c0_8] : memref<1x4x1xf32, #tpu.memory_space<vmem>>, vector<1x4x1xf32>
    %21 = vector.shape_cast %20 : vector<1x4x1xf32> to vector<4x1xf32>
    %22 = vector.broadcast %21 : vector<4x1xf32> to vector<4x256xf32>
    %23 = arith.mulf %19, %22 : vector<4x256xf32>
    %c0_9 = arith.constant 0 : index
    %c0_10 = arith.constant 0 : index
    %c0_11 = arith.constant 0 : index
    %24 = vector.load %arg3[%c0_9, %c0_10, %c0_11] : memref<1x4x1xf32, #tpu.memory_space<vmem>>, vector<1x4x1xf32>
    %25 = vector.shape_cast %24 : vector<1x4x1xf32> to vector<4x1xf32>
    %26 = vector.broadcast %25 : vector<4x1xf32> to vector<4x256xf32>
    %27 = arith.addf %23, %26 : vector<4x256xf32>
    %c0_12 = arith.constant 0 : index
    %c0_13 = arith.constant 0 : index
    %c0_14 = arith.constant 0 : index
    %28 = vector.load %arg4[%c0_12, %c0_13, %c0_14] : memref<1x4x256xf32, #tpu.memory_space<vmem>>, vector<1x4x256xf32>
    %29 = vector.shape_cast %28 : vector<1x4x256xf32> to vector<4x256xf32>
    %30 = vector.shape_cast %27 : vector<4x256xf32> to vector<1x4x256xf32>
    tpu.vector_store %arg4[%c0_12, %c0_13, %c0_14], %30 {strides = array<i32>} : memref<1x4x256xf32, #tpu.memory_space<vmem>>, vector<1x4x256xf32>,
    return
  }
  func.func @transform_0(%arg0: i32) -> (i32, i32, i32) {
    %c0_i32 = arith.constant 0 : i32
    %c0_i32_0 = arith.constant 0 : i32
    %c0_i32_1 = arith.constant 0 : i32
    return %arg0, %c0_i32, %c0_i32_0 : i32, i32, i32
  }
  func.func @transform_1(%arg0: i32) -> (i32, i32, i32) {
    %c0_i32 = arith.constant 0 : i32
    %c0_i32_0 = arith.constant 0 : i32
    %c0_i32_1 = arith.constant 0 : i32
    return %arg0, %c0_i32, %c0_i32_0 : i32, i32, i32
  }
  func.func @transform_2(%arg0: i32) -> (i32, i32, i32) {
    %c0_i32 = arith.constant 0 : i32
    %c0_i32_0 = arith.constant 0 : i32
    %c0_i32_1 = arith.constant 0 : i32
    return %arg0, %c0_i32, %c0_i32_0 : i32, i32, i32
  }
  func.func @transform_3(%arg0: i32) -> (i32, i32, i32) {
    %c0_i32 = arith.constant 0 : i32
    %c0_i32_0 = arith.constant 0 : i32
    %c0_i32_1 = arith.constant 0 : i32
    return %arg0, %c0_i32, %c0_i32_0 : i32, i32, i32
  }
}

</mosaic_0001>

<llo_original>
// kernel: tpu_custom_call.1
$region0: #{tpu_custom_call.1}
  #allocation0 [shape = 'u32[]', space=smem, size = 0x4, offset = 0x4, fixed_abs, tag = 'smem constant byte address 0x4 - core index']
  #allocation1 [shape = 'u32[72,128]{1,0:T(1,128)}', space=vmem, size = 0x9000, scoped, tag = 'internal scratch']
  %s0 = inlined_call_operand.vmem [shape: f32[2,4,256], index: 0, kind: input, shape index: {}]
  %s1 = inlined_call_operand.vmem [shape: f32[2,4,1], index: 1, kind: input, shape index: {}]
  %s2 = inlined_call_operand.vmem [shape: f32[2,4,1], index: 2, kind: input, shape index: {}]
  %s3 = inlined_call_operand.hbm [shape: f32[2,4,256], index: 3, kind: output, shape index: {}]
  %s4 = sld [smem:[#allocation0]]
  $region45: #{tpu_custom_call.1} parent=0
    _
  %s6 = ssub.s32 1, %s4
  %s7 = scalar_select 0, %s6, %s4
  $region1: #{tpu_custom_call.1} parent=0
    #allocation2 [shape = 'u8[8192]{0}', space=vmem, size = 0x2000, scoped, tag = 'output window, operand 0']
    #allocation3 [shape = 's32[2]{0}', space=sflag, size = 0x8, scoped, tag = 'scoped memory for tpu_custom_call.1']
    %8 = vsyncpa [#allocation3], 0
    %s9 = scalar_lea.sflag [#allocation3], 1
    %10 = vsyncpa %s9, 0
    loop: start=0, step=1, limit=4
    $region2: #{tpu_custom_call.1} parent=1 // loop_pre_header
      _
    $region3: #{tpu_custom_call.1} parent=1 // loop_header
      %s12 = sphi 0, %s16
      %p13 = scmp.ge.s32.totalorder %s12, 4
      %s22 = sphi 0, %s24
      %s25 = sphi 0, %s22
      %s26 = sphi 0, %s25
      %s42 = sphi 0, %s26
      %s48 = sphi 0, %s50
      %s51 = sphi 0, %s48
      %s52 = sphi 0, %s51
      %s68 = sphi 0, %s52
      %s74 = sphi 0, %s76
      %s77 = sphi 0, %s74
      %s78 = sphi 0, %s77
      %s94 = sphi 0, %s78
      %s100 = sphi 0, %s102
      %s103 = sphi 0, %s100
      %s104 = sphi 0, %s103
      %s120 = sphi 0, %s104
    $region4: #{tpu_custom_call.1} parent=1 // loop_header_branch
      %15 = sbr.rel (%p13) target = $region8
    $region5: #{tpu_custom_call.1} parent=1 // loop_body
      %s17 = ssub.s32 %s12, 1
      %s18 = ssub.s32 %s12, 2
      %s19 = sadd.s32 %s12, 1
      %s20 = ssub.s32 %s12, %s19
      %p21 = scmp.eq.s32.totalorder %s20, 0
      %s23 = sadd.s32 %s22, 1
      %s24 = scalar_select %p21, %s22, %s23
      %p27 = pneg %p21
      %p28 = scmp.eq.s32.totalorder %s12, 1
      %p29 = por %p27, %p28
      %p30 = scmp.ne.s32.totalorder %s22, %s25
      %p31 = scmp.eq.s32.totalorder %s12, 0
      %p32 = por %p30, %p31
      %p33 = scmp.ne.s32.totalorder %s22, %s25
      %p34 = scmp.eq.s32.totalorder %s17, 1
      %p35 = por %p33, %p34
      %p36 = scmp.ne.s32.totalorder %s25, %s26
      %p37 = scmp.eq.s32.totalorder %s17, 0
      %p38 = por %p36, %p37
      %p39 = scmp.ne.s32.totalorder %s25, %s26
      %p40 = scmp.eq.s32.totalorder %s18, 1
      %p41 = por %p39, %p40
      %p43 = scmp.ne.s32.totalorder %s26, %s42
      %p44 = scmp.eq.s32.totalorder %s18, 0
      %p45 = por %p43, %p44
      %s46 = ssub.s32 %s12, %s19
      %p47 = scmp.eq.s32.totalorder %s46, 0
      %s49 = sadd.s32 %s48, 1
      %s50 = scalar_select %p47, %s48, %s49
      %p53 = pneg %p47
      %p54 = scmp.eq.s32.totalorder %s12, 1
      %p55 = por %p53, %p54
      %p56 = scmp.ne.s32.totalorder %s48, %s51
      %p57 = scmp.eq.s32.totalorder %s12, 0
      %p58 = por %p56, %p57
      %p59 = scmp.ne.s32.totalorder %s48, %s51
      %p60 = scmp.eq.s32.totalorder %s17, 1
      %p61 = por %p59, %p60
      %p62 = scmp.ne.s32.totalorder %s51, %s52
      %p63 = scmp.eq.s32.totalorder %s17, 0
      %p64 = por %p62, %p63
      %p65 = scmp.ne.s32.totalorder %s51, %s52
      %p66 = scmp.eq.s32.totalorder %s18, 1
      %p67 = por %p65, %p66
      %p69 = scmp.ne.s32.totalorder %s52, %s68
      %p70 = scmp.eq.s32.totalorder %s18, 0
      %p71 = por %p69, %p70
      %s72 = ssub.s32 %s12, %s19
      %p73 = scmp.eq.s32.totalorder %s72, 0
      %s75 = sadd.s32 %s74, 1
      %s76 = scalar_select %p73, %s74, %s75
      %p79 = pneg %p73
      %p80 = scmp.eq.s32.totalorder %s12, 1
      %p81 = por %p79, %p80
      %p82 = scmp.ne.s32.totalorder %s74, %s77
      %p83 = scmp.eq.s32.totalorder %s12, 0
      %p84 = por %p82, %p83
      %p85 = scmp.ne.s32.totalorder %s74, %s77
      %p86 = scmp.eq.s32.totalorder %s17, 1
      %p87 = por %p85, %p86
      %p88 = scmp.ne.s32.totalorder %s77, %s78
      %p89 = scmp.eq.s32.totalorder %s17, 0
      %p90 = por %p88, %p89
      %p91 = scmp.ne.s32.totalorder %s77, %s78
      %p92 = scmp.eq.s32.totalorder %s18, 1
      %p93 = por %p91, %p92
      %p95 = scmp.ne.s32.totalorder %s78, %s94
      %p96 = scmp.eq.s32.totalorder %s18, 0
      %p97 = por %p95, %p96
      %s98 = ssub.s32 %s12, %s19
      %p99 = scmp.eq.s32.totalorder %s98, 0
      %s101 = sadd.s32 %s100, 1
      %s102 = scalar_select %p99, %s100, %s101
      %p105 = pneg %p99
      %p106 = scmp.eq.s32.totalorder %s12, 1
      %p107 = por %p105, %p106
      %p108 = scmp.ne.s32.totalorder %s100, %s103
      %p109 = scmp.eq.s32.totalorder %s12, 0
      %p110 = por %p108, %p109
      %p111 = scmp.ne.s32.totalorder %s100, %s103
      %p112 = scmp.eq.s32.totalorder %s17, 1
      %p113 = por %p111, %p112
      %p114 = scmp.ne.s32.totalorder %s103, %s104
      %p115 = scmp.eq.s32.totalorder %s17, 0
      %p116 = por %p114, %p115
      %p117 = scmp.ne.s32.totalorder %s103, %s104
      %p118 = scmp.eq.s32.totalorder %s18, 1
      %p119 = por %p117, %p118
      %p121 = scmp.ne.s32.totalorder %s104, %s120
      %p122 = scmp.eq.s32.totalorder %s18, 0
      %p123 = por %p121, %p122
      %p124 = scmp.le.s32.totalorder 1, %s12
      %p125 = scmp.lt.s32.totalorder %s12, 3
      %p126 = pnand %p124, %p125
      %p127 = pneg %p126
      // Predicated region
      $region9: #{tpu_custom_call.1} parent=5 // pred_check
        _
      $region10: #{tpu_custom_call.1} parent=5 // pred_check_branch
        %129 = sbr.rel (%p126) target = $region12
      $region11: #{tpu_custom_call.1} parent=5 // pred_region
        %s130 = ssub.s32 %s12, 1
      $region12: #{tpu_custom_call.1} parent=5 // pred_fallthru
        _
      %p131 = scmp.lt.s32.totalorder %s12, 2
      // Predicated region
      $region13: #{tpu_custom_call.1} parent=5 // pred_check
        %p132 = pneg %p131
      $region14: #{tpu_custom_call.1} parent=5 // pred_check_branch
        %134 = sbr.rel (%p132) target = $region16
      $region15: #{tpu_custom_call.1} parent=5 // pred_region
        // Predicated region
        $region17: #{tpu_custom_call.1} parent=15 // pred_check
          %p135 = pneg %p32
        $region18: #{tpu_custom_call.1} parent=15 // pred_check_branch
          %137 = sbr.rel (%p135) target = $region20
        $region19: #{tpu_custom_call.1} parent=15 // pred_region
          %p138 = scmp.lt.s32.totalorder %s12, 1
          %s139 = scalar_select %p138, %s12, 1
          %s140 = smul.addr %s139, 2
          %s141 = smul.addr %s140, 4
          %s142 = scalar_lea.vmem %s0, %s141
        $region20: #{tpu_custom_call.1} parent=15 // pred_fallthru
          _
        // Predicated region
        $region21: #{tpu_custom_call.1} parent=15 // pred_check
          %p143 = pneg %p58
        $region22: #{tpu_custom_call.1} parent=15 // pred_check_branch
          %145 = sbr.rel (%p143) target = $region24
        $region23: #{tpu_custom_call.1} parent=15 // pred_region
          %p146 = scmp.lt.s32.totalorder %s12, 1
          %s147 = scalar_select %p146, %s12, 1
          %s148 = smul.addr %s147, 4
          %s149 = scalar_lea.vmem %s1, %s148
        $region24: #{tpu_custom_call.1} parent=15 // pred_fallthru
          _
        // Predicated region
        $region25: #{tpu_custom_call.1} parent=15 // pred_check
          %p150 = pneg %p84
        $region26: #{tpu_custom_call.1} parent=15 // pred_check_branch
          %152 = sbr.rel (%p150) target = $region28
        $region27: #{tpu_custom_call.1} parent=15 // pred_region
          %p153 = scmp.lt.s32.totalorder %s12, 1
          %s154 = scalar_select %p153, %s12, 1
          %s155 = smul.addr %s154, 4
          %s156 = scalar_lea.vmem %s2, %s155
        $region28: #{tpu_custom_call.1} parent=15 // pred_fallthru
          _
      $region16: #{tpu_custom_call.1} parent=5 // pred_fallthru
        _
      %p157 = scmp.le.s32.totalorder 1, %s12
      %p158 = scmp.lt.s32.totalorder %s12, 3
      %p159 = pnand %p157, %p158
      %p160 = pneg %p159
      // Predicated region
      $region29: #{tpu_custom_call.1} parent=5 // pred_check
        _
      $region30: #{tpu_custom_call.1} parent=5 // pred_check_branch
        %162 = sbr.rel (%p159) target = $region32
      $region31: #{tpu_custom_call.1} parent=5 // pred_region
        %s163 = ssub.s32 %s12, 1
        %p164 = scmp.lt.s32.totalorder %s17, 1
        %s165 = scalar_select %p164, %s17, 1
        %s166 = smul.addr %s165, 2
        %s167 = smul.addr %s166, 4
        %s168 = scalar_lea.vmem %s0, %s167
        %p169 = pneg %p38
        %p170 = pneg %p35
        %p171 = scmp.lt.s32.totalorder %s17, 1
        %s172 = scalar_select %p171, %s17, 1
        %s173 = smul.addr %s172, 4
        %s174 = scalar_lea.vmem %s1, %s173
        %p175 = pneg %p64
        %p176 = pneg %p61
        %p177 = scmp.lt.s32.totalorder %s17, 1
        %s178 = scalar_select %p177, %s17, 1
        %s179 = smul.addr %s178, 4
        %s180 = scalar_lea.vmem %s2, %s179
        %p181 = pneg %p90
        %p182 = pneg %p87
        %p183 = pneg %p116
        %p184 = pneg %p113
        %s185 = sand.u32 %s103, 1
        %s186 = scalar_lea.sflag [#allocation3], %s185
        %s187 = sand.u32 %s103, 1
        %s188 = smul.addr %s187, 8
        %s189 = scalar_lea.vmem [#allocation2], %s188
        %p190 = scmp.lt.s32.totalorder %s17, 1
        %s191 = scalar_select %p190, %s17, 1
        %s192 = smul.addr %s191, 2
        %s193 = smul.addr %s192, 4
        %s194 = scalar_lea.vmem %s0, %s193
        %p195 = scmp.lt.s32.totalorder %s17, 1
        %s196 = scalar_select %p195, %s17, 1
        %s197 = smul.addr %s196, 4
        %s198 = scalar_lea.vmem %s1, %s197
        %p199 = scmp.lt.s32.totalorder %s17, 1
        %s200 = scalar_select %p199, %s17, 1
        %s201 = smul.addr %s200, 4
        %s202 = scalar_lea.vmem %s2, %s201
        %v203 = vld [vmem:[%s194] sm:$0xff]
        %205 = vst [vmem:[#allocation1] ss:$2 sm:$0xff] %v203
        %v206 = vld.sshfl [vmem:[#allocation1] sm:$0xff pattern:$0x75316420]
        %v207 = vld.sshfl [vmem:[#allocation1 + $0x8] sm:$0xff pattern:$0x75316420]
        %vm210 = vcmask 1043456
        %v211 = vsel %vm210, %v206, 0.0
        %v212 = vsel %vm210, %v207, 0.0
        %v213 = vadd.f32 %v211, %v212
        %214 = vadd.xlane.f32.xlu0 %v213
        %v215 = vpop.xlane.xlu0 %214
        %v216 = vrcp.pop 256.0
        %v217 = vmul.f32 256.0, %v216
        %v218 = vsub.f32 1.0, %v217
        %v219 = vmul.f32 %v216, %v218
        %v220 = vadd.f32 %v216, %v219
        %vm221 = vweird.f32 %v216
        %v222 = vsel %vm221, %v216, %v220
        %v223 = vmul.f32 %v215, %v222
        %v226 = vunpack.c.l.s4 839922192
        %v227 = vunpack.c.0.s8 %v226
        %v228 = vperm.slane %v223, %v227
        %v230 = vsub.f32 %v203, %v228
        %v231 = vmul.f32 %v230, %v230
        %233 = vst [vmem:[#allocation1] ss:$2 sm:$0xff] %v231
        %v234 = vld.sshfl [vmem:[#allocation1] sm:$0xff pattern:$0x75316420]
        %v235 = vld.sshfl [vmem:[#allocation1 + $0x8] sm:$0xff pattern:$0x75316420]
        %v238 = vsel %vm210, %v234, 0.0
        %v239 = vsel %vm210, %v235, 0.0
        %v240 = vadd.f32 %v238, %v239
        %241 = vadd.xlane.f32.xlu0 %v240
        %v242 = vpop.xlane.xlu0 %241
        %v243 = vmul.f32 %v242, %v222
        %v244 = vadd.f32 %v243, 1e-05
        %v245 = vrsqrt.pop %v244
        %v246 = vmul.f32 %v245, %v244
        %v247 = vmul.f32 %v246, %v245
        %v248 = vmul.f32 0.5, %v247
        %v249 = vsub.f32 1.5, %v248
        %v250 = vmul.f32 %v245, %v249
        %vm251 = vweird.f32 %v244
        %vm252 = vweird.f32 %v245
        %vm253 = vmor %vm251, %vm252
        %v254 = vsel %vm253, %v245, %v250
        %v257 = vunpack.c.l.s4 839922192
        %v258 = vunpack.c.0.s8 %v257
        %v259 = vperm.slane %v254, %v258
        %v261 = vmul.f32 %v230, %v259
        %v262 = vld [vmem:[%s198] sm:$0xf]
        %264 = vset.pattern.permute.xlu0 0
        %265 = vperm.xlu0 %264, %v262
        %v266 = vpop.permute.xlu0 %265
        %v268 = vunpack.c.l.s4 839922192
        %v269 = vunpack.c.0.s8 %v268
        %v270 = vperm.slane %v266, %v269
        %v272 = vmul.f32 %v261, %v270
        %v273 = vld [vmem:[%s202] sm:$0xf]
        %275 = vset.pattern.permute.xlu0 0
        %276 = vperm.xlu0 %275, %v273
        %v277 = vpop.permute.xlu0 %276
        %v279 = vunpack.c.l.s4 839922192
        %v280 = vunpack.c.0.s8 %v279
        %v281 = vperm.slane %v277, %v280
        %v283 = vadd.f32 %v272, %v281
        %284 = vst [vmem:[%s189] sm:$0xff] %v283
        %s285 = sand.u32 %s103, 1
        %s286 = scalar_lea.sflag [#allocation3], %s285
        %s287 = sand.u32 %s103, 1
        %s288 = smul.addr %s287, 8
        %s289 = scalar_lea.vmem [#allocation2], %s288
        // Predicated region
        $region33: #{tpu_custom_call.1} parent=31 // pred_check
          %p290 = pneg %p113
        $region34: #{tpu_custom_call.1} parent=31 // pred_check_branch
          %292 = sbr.rel (%p290) target = $region36
        $region35: #{tpu_custom_call.1} parent=31 // pred_region
          %294 = vsyncadd %s286, 0
          %s295 = smul.addr %s17, 2
          %s296 = smul.addr %s295, 4
          %s297 = scalar_lea.hbm %s3, %s296
          %s299 = sshll.u32 %s289, 4
          %s300 = int_to_ptr.vmem [resolvable:$true] %s299
          %s301 = sshll.u32 %s297, 4
          %s302 = int_to_ptr.hbm [resolvable:$true] %s301
          %304 = dma.vmem_to_hbm [thread:$0]  %s300, 128, %s302, %s286
        $region36: #{tpu_custom_call.1} parent=31 // pred_fallthru
          _
      $region32: #{tpu_custom_call.1} parent=5 // pred_fallthru
        _
      %p305 = scmp.le.s32.totalorder 2, %s12
      // Predicated region
      $region37: #{tpu_custom_call.1} parent=5 // pred_check
        %p306 = pneg %p305
      $region38: #{tpu_custom_call.1} parent=5 // pred_check_branch
        %308 = sbr.rel (%p306) target = $region40
      $region39: #{tpu_custom_call.1} parent=5 // pred_region
        %s309 = ssub.s32 %s12, 2
        // Predicated region
        $region41: #{tpu_custom_call.1} parent=39 // pred_check
          %p310 = pneg %p119
        $region42: #{tpu_custom_call.1} parent=39 // pred_check_branch
          %312 = sbr.rel (%p310) target = $region44
        $region43: #{tpu_custom_call.1} parent=39 // pred_region
          %s313 = sand.u32 %s104, 1
          %s314 = scalar_lea.sflag [#allocation3], %s313
          %s315 = sand.u32 %s104, 1
          %s316 = smul.addr %s315, 8
          %s317 = scalar_lea.vmem [#allocation2], %s316
          %319 = dma.done %s314, 128
        $region44: #{tpu_custom_call.1} parent=39 // pred_fallthru
          _
      $region40: #{tpu_custom_call.1} parent=5 // pred_fallthru
        _
    $region6: #{tpu_custom_call.1} parent=1 // loop_footer
      %s16 = sadd.s32 1, %s12
    $region7: #{tpu_custom_call.1} parent=1 // loop_footer_branch
      %11 = sbr.rel target = $region3
    $region8: #{tpu_custom_call.1} parent=1 // loop_exit
      _
    %320 = vsyncpa [#allocation3], 1
    %s321 = scalar_lea.sflag [#allocation3], 1
    %322 = vsyncpa %s321, 1

</llo_original>
